<compile_context>
chip_gen: v6e
topology: v6e:2x2x1
jax: 0.10.0
libtpu: 0.0.40
codegen_flags: <defaults>
</compile_context>

<pallas_src>
import functools

import jax
import jax.numpy as jnp
from jax.experimental import pallas as pl
from jax.experimental.pallas import tpu as pltpu


def _round_up(x, m):
    return ((x + m - 1) // m) * m


def _person_mse_kernel(pred_ref, gt_ref, w_ref, o_ref, *,
                       rows_total, cols_total, tile_rows, tile_cols,
                       need_row_mask, need_col_mask):
    # Upcast BEFORE subtracting so bf16/fp16 heatmaps don't cancel in the narrow dtype.
    p = pred_ref[...].astype(jnp.float32)                         # (TR, TC)
    g = gt_ref[...].astype(jnp.float32)                           # (TR, TC)
    d = p - g
    if need_col_mask:
        # Zero out lanes past the true column extent (ragged last column tile).
        col0 = pl.program_id(1) * tile_cols
        cid = col0 + jax.lax.broadcasted_iota(jnp.int32, (tile_rows, tile_cols), 1)
        d = jnp.where(cid < cols_total, d, 0.0)                   # NaN-safe
    # Reduce along lanes first, then weight per row: sum w^2 * sum_c d^2.
    rowssq = jnp.sum(d * d, axis=-1, keepdims=True)               # (TR, 1)
    w = w_ref[...].astype(jnp.float32)                            # (TR, 1)
    contrib = rowssq * (w * w)                                    # (TR, 1)
    if need_row_mask:
        # Zero out rows past the true extent (ragged last row tile).
        row0 = pl.program_id(0) * tile_rows
        rid = row0 + jax.lax.broadcasted_iota(jnp.int32, (tile_rows, 1), 0)
        contrib = jnp.where(rid < rows_total, contrib, 0.0)       # NaN-safe
    # One partial sum per grid step, written to this step's own output block.
    o_ref[...] = jnp.sum(contrib).reshape(1, 1, 1, 1)


def _tile_plan(R, C, itemsize):
    """Pick (TR, TC, vmem_cap) given the slab shape and dtype size."""
    # Generation-aware VMEM capacity (v7x: 64 MiB/TC, v5e/v6e: 128 MiB).
    try:
        vmem_cap = int(pltpu.get_tpu_info().vmem_capacity_bytes)
    except Exception:
        vmem_cap = 64 << 20                       # conservative fallback (v7x-sized)
    small_vmem = vmem_cap <= (64 << 20)
    tile_budget = (4 << 20) if small_vmem else (8 << 20)   # per input, per buffer

    # --- Column tiling: only when an 8-row strip across full C exceeds the budget ---
    if 8 * C * itemsize <= tile_budget or C <= 128:
        TC = C
    else:
        TC = max(128, (tile_budget // (8 * itemsize)) // 128 * 128)
        TC = min(TC, C)
    NTc = pl.cdiv(C, TC)

    # --- Row tiling: fill the budget, but keep >= ~4 total tiles for megacore -------
    if R <= 8:
        TR = R
    else:
        row_bytes = max(TC * itemsize, 1)
        rows_fit = max(8, (tile_budget // row_bytes) // 8 * 8)
        want_row_tiles = max(1, -(-4 // NTc))     # ceil(4 / NTc) row tiles
        tr_balanced = _round_up(pl.cdiv(R, want_row_tiles), 8)
        TR = min(rows_fit, tr_balanced)
        if TR >= R:
            TR = R                                # full-dim block is always legal
    return TR, TC, vmem_cap, small_vmem


@jax.jit
def person_mse_loss(output, target, target_weight):
    """output, target: (B, J, H, W); target_weight: (B, J, 1). Returns scalar f32."""
    B, J, H, W = output.shape
    R, C = B * J, H * W

    pred = output.reshape(R, C)
    gt = target.reshape(R, C)
    w = target_weight.reshape(R, 1)

    itemsize = jnp.dtype(output.dtype).itemsize
    TR, TC, vmem_cap, small_vmem = _tile_plan(R, C, itemsize)
    NTr, NTc = pl.cdiv(R, TR), pl.cdiv(C, TC)
    need_row_mask = (R % TR) != 0
    need_col_mask = (C % TC) != 0

    # --- VMEM budget: 2 pipeline buffers x (pred + gt + weight tiles), never below need
    tile_in_bytes = TR * TC * itemsize
    w_tile_bytes = TR * jnp.dtype(target_weight.dtype).itemsize
    need = 2 * (2 * tile_in_bytes + w_tile_bytes) + (1 << 20)
    cap = (56 << 20) if small_vmem else (96 << 20)
    vmem_limit = int(max(need, min(max(32 << 20, need), cap)))

    kernel = functools.partial(
        _person_mse_kernel,
        rows_total=R, cols_total=C, tile_rows=TR, tile_cols=TC,
        need_row_mask=need_row_mask, need_col_mask=need_col_mask)

    partials = pl.pallas_call(
        kernel,
        out_shape=jax.ShapeDtypeStruct((NTr, NTc, 1, 1), jnp.float32),
        grid=(NTr, NTc),
        in_specs=[
            pl.BlockSpec((TR, TC), lambda i, j: (i, j)),   # pred tile
            pl.BlockSpec((TR, TC), lambda i, j: (i, j)),   # gt tile
            pl.BlockSpec((TR, 1), lambda i, j: (i, 0)),    # per-row weights (reused per col tile)
        ],
        out_specs=pl.BlockSpec((1, 1, 1, 1), lambda i, j: (i, j, 0, 0)),
        compiler_params=pltpu.CompilerParams(
            dimension_semantics=("parallel", "parallel"),   # independent tiles -> megacore OK
            vmem_limit_bytes=vmem_limit,
        ),
    )(pred, gt, w)

    ssq = jnp.sum(partials)                        # tiny (NTr,NTc,1,1) reduction in XLA
    scale = 0.5 / (J * B * H * W)
    return (scale * ssq).astype(jnp.float32)


def person_mse_loss_ref(output, target, target_weight):
    """Pure-JAX reference mirroring the PyTorch loop semantics."""
    B, J = output.shape[0], output.shape[1]
    pred = output.reshape(B, J, -1).astype(jnp.float32)
    gt = target.reshape(B, J, -1).astype(jnp.float32)
    tw = target_weight.astype(jnp.float32)
    loss = 0.0
    for idx in range(J):
        hp = pred[:, idx, :] * tw[:, idx, :]
        hg = gt[:, idx, :] * tw[:, idx, :]
        loss = loss + 0.5 * jnp.mean((hp - hg) ** 2)
    return loss / J


if __name__ == "__main__":
    key = jax.random.PRNGKey(0)

    # Case 1: small canonical shape (B=2, J=4, 16x16 heatmaps).
    B, J, H, W = 2, 4, 16, 16
    k1, k2, k3, key = jax.random.split(key, 4)
    output = jax.random.normal(k1, (B, J, H, W), dtype=jnp.float32)
    target = jax.random.normal(k2, (B, J, H, W), dtype=jnp.float32)
    target_weight = jax.random.uniform(k3, (B, J, 1), dtype=jnp.float32)

    loss = person_mse_loss(output, target, target_weight)
    jax.block_until_ready(loss)
    ref = person_mse_loss_ref(output, target, target_weight)
    assert jnp.allclose(loss, ref, rtol=1e-5, atol=1e-6), (loss, ref)

    # Case 2: row count not a multiple of the row tile (exercises the ragged-row mask).
    B2, J2, H2, W2 = 3, 7, 16, 16
    k4, k5, k6, key = jax.random.split(key, 4)
    out2 = jax.random.normal(k4, (B2, J2, H2, W2), dtype=jnp.float32)
    tgt2 = jax.random.normal(k5, (B2, J2, H2, W2), dtype=jnp.float32)
    tw2 = jax.random.uniform(k6, (B2, J2, 1), dtype=jnp.float32)

    loss2 = person_mse_loss(out2, tgt2, tw2)
    jax.block_until_ready(loss2)
    ref2 = person_mse_loss_ref(out2, tgt2, tw2)
    assert jnp.allclose(loss2, ref2, rtol=1e-5, atol=1e-6), (loss2, ref2)

    print("KERNEL_OK")
</pallas_src>

<mosaic_0001>
module attributes {stable_mosaic.version = 11 : i64} {
  func.func @_person_mse_kernel(%arg0: i32, %arg1: i32, %arg2: memref<8x256xf32, #tpu.memory_space<vmem>>, %arg3: memref<8x256xf32, #tpu.memory_space<vmem>>, %arg4: memref<8x1xf32, #tpu.memory_space<vmem>>, %arg5: memref<1x1x1x1xf32, #tpu.memory_space<vmem>>) attributes {dimension_semantics = [#tpu.dimension_semantics<parallel>, #tpu.dimension_semantics<parallel>], iteration_bounds = array<i64: 1, 1>, scalar_prefetch = 0 : i64, scratch_operands = 0 : i64, tpu.core_type = #tpu.core_type<tc>, window_params = [{transform_indices = @transform_0, window_bounds = array<i64: 8, 256>}, {transform_indices = @transform_1, window_bounds = array<i64: 8, 256>}, {transform_indices = @transform_2, window_bounds = array<i64: 8, 1>}, {transform_indices = @transform_3, window_bounds = array<i64: 1, 1, 1, 1>}]} {
    %c0 = arith.constant 0 : index
    %c0_0 = arith.constant 0 : index
    %0 = vector.load %arg2[%c0, %c0_0] : memref<8x256xf32, #tpu.memory_space<vmem>>, vector<8x256xf32>
    %c0_1 = arith.constant 0 : index
    %c0_2 = arith.constant 0 : index
    %1 = vector.load %arg3[%c0_1, %c0_2] : memref<8x256xf32, #tpu.memory_space<vmem>>, vector<8x256xf32>
    %2 = arith.subf %0, %1 : vector<8x256xf32>
    %3 = arith.mulf %2, %2 : vector<8x256xf32>
    %cst = arith.constant dense<0.000000e+00> : vector<8xf32>
    %4 = vector.multi_reduction <add>, %3, %cst [1] : vector<8x256xf32> to vector<8xf32>
    %5 = vector.shape_cast %4 : vector<8xf32> to vector<8x1xf32>
    %c0_3 = arith.constant 0 : index
    %c0_4 = arith.constant 0 : index
    %6 = vector.load %arg4[%c0_3, %c0_4] : memref<8x1xf32, #tpu.memory_space<vmem>>, vector<8x1xf32>
    %7 = arith.mulf %6, %6 : vector<8x1xf32>
    %8 = arith.mulf %5, %7 : vector<8x1xf32>
    %9 = vector.shape_cast %8 : vector<8x1xf32> to vector<1x8x1xf32>
    %cst_5 = arith.constant dense<0.000000e+00> : vector<1xf32>
    %10 = vector.multi_reduction <add>, %9, %cst_5 [1, 2] : vector<1x8x1xf32> to vector<1xf32>
    %11 = vector.shape_cast %10 : vector<1xf32> to vector<1x1x1xf32>
    %12 = vector.extract %11[0, 0, 0] : f32 from vector<1x1x1xf32>
    %13 = vector.broadcast %12 : f32 to vector<1x1x1x1xf32>
    %c0_6 = arith.constant 0 : index
    %c0_7 = arith.constant 0 : index
    %c0_8 = arith.constant 0 : index
    %c0_9 = arith.constant 0 : index
    %14 = vector.load %arg5[%c0_6, %c0_7, %c0_8, %c0_9] : memref<1x1x1x1xf32, #tpu.memory_space<vmem>>, vector<1x1x1x1xf32>
    tpu.vector_store %arg5[%c0_6, %c0_7, %c0_8, %c0_9], %13 {strides = array<i32>} : memref<1x1x1x1xf32, #tpu.memory_space<vmem>>, vector<1x1x1x1xf32>,
    return
  }
  func.func @transform_0(%arg0: i32, %arg1: i32) -> (i32, i32) {
    %c0_i32 = arith.constant 0 : i32
    return %arg0, %arg1 : i32, i32
  }
  func.func @transform_1(%arg0: i32, %arg1: i32) -> (i32, i32) {
    %c0_i32 = arith.constant 0 : i32
    return %arg0, %arg1 : i32, i32
  }
  func.func @transform_2(%arg0: i32, %arg1: i32) -> (i32, i32) {
    %c0_i32 = arith.constant 0 : i32
    %c0_i32_0 = arith.constant 0 : i32
    return %arg0, %c0_i32 : i32, i32
  }
  func.func @transform_3(%arg0: i32, %arg1: i32) -> (i32, i32, i32, i32) {
    %c0_i32 = arith.constant 0 : i32
    %c0_i32_0 = arith.constant 0 : i32
    %c0_i32_1 = arith.constant 0 : i32
    return %arg0, %arg1, %c0_i32, %c0_i32_0 : i32, i32, i32, i32
  }
}

</mosaic_0001>

<llo_original>
// kernel: person_mse_loss.1
$region0: #{person_mse_loss.1}
  #allocation0 [shape = 'u32[]', space=smem, size = 0x4, offset = 0x4, fixed_abs, tag = 'smem constant byte address 0x4 - core index']
  #allocation1 [shape = 'u32[144,128]{1,0:T(1,128)}', space=vmem, size = 0x12000, scoped, tag = 'internal scratch']
  %s0 = inlined_call_operand.vmem [shape: f32[8,256], index: 0, kind: input, shape index: {}]
  %s1 = inlined_call_operand.vmem [shape: f32[8,256], index: 1, kind: input, shape index: {}]
  %s2 = inlined_call_operand.vmem [shape: f32[8,1], index: 2, kind: input, shape index: {}]
  %s3 = inlined_call_operand.hbm [shape: f32[1,1,1,1], index: 3, kind: output, shape index: {}]
  %s4 = sld [smem:[#allocation0]]
  $region22: #{person_mse_loss.1} parent=0
    _
  %s6 = ssub.s32 1, %s4
  %s7 = scalar_select 0, %s6, %s4
  $region1: #{person_mse_loss.1} parent=0
    #allocation2 [shape = 'u8[512]{0}', space=vmem, size = 0x400, scoped, tag = 'output window, operand 0, single buffered']
    #allocation3 [shape = 's32[1]{0}', space=sflag, size = 0x4, scoped, tag = 'scoped memory for person_mse_loss.1']
    %8 = vsyncpa [#allocation3], 0
    // Predicated region
    $region2: #{person_mse_loss.1} parent=1 // pred_check
      _
    $region3: #{person_mse_loss.1} parent=1 // pred_check_branch
      %10 = sbr.rel (0) target = $region5
    $region4: #{person_mse_loss.1} parent=1 // pred_region
      _
    $region5: #{person_mse_loss.1} parent=1 // pred_fallthru
      _
    // Predicated region
    $region6: #{person_mse_loss.1} parent=1 // pred_check
      _
    $region7: #{person_mse_loss.1} parent=1 // pred_check_branch
      %12 = sbr.rel (0) target = $region9
    $region8: #{person_mse_loss.1} parent=1 // pred_region
      _
    $region9: #{person_mse_loss.1} parent=1 // pred_fallthru
      _
    // Predicated region
    $region10: #{person_mse_loss.1} parent=1 // pred_check
      _
    $region11: #{person_mse_loss.1} parent=1 // pred_check_branch
      %14 = sbr.rel (0) target = $region13
    $region12: #{person_mse_loss.1} parent=1 // pred_region
      _
    $region13: #{person_mse_loss.1} parent=1 // pred_fallthru
      _
    %v15 = vld [vmem:[%s0] sm:$0xff]
    %v16 = vld [vmem:[%s0 + $0x8] sm:$0xff]
    %v17 = vld [vmem:[%s1] sm:$0xff]
    %v18 = vld [vmem:[%s1 + $0x8] sm:$0xff]
    %v19 = vsub.f32 %v15, %v17
    %v20 = vsub.f32 %v16, %v18
    %v21 = vmul.f32 %v19, %v19
    %v22 = vmul.f32 %v20, %v20
    %v23 = vadd.f32 %v21, %v22
    %24 = vadd.xlane.f32.xlu0 %v23
    %v25 = vpop.xlane.xlu0 %24
    %v26 = vld [vmem:[%s2] sm:$0xff]
    %v27 = vmul.f32 %v26, %v26
    %v28 = vmul.f32 %v25, %v27
    %vm29 = vcmask 7168
    %v30 = vsel %vm29, %v28, 0.0
    %31 = vadd.xlane.f32.xlu0 %v30
    %v32 = vpop.xlane.xlu0 %31
    %v33 = vrot.slane %v32, 4
    %v34 = vadd.f32 %v32, %v33
    %v35 = vrot.slane %v34, 2
    %v36 = vadd.f32 %v34, %v35
    %v37 = vrot.slane %v36, 1
    %v38 = vadd.f32 %v36, %v37
    %s39 = vtos %v38
    %v40 = vstv %s39
    %vm41 = vcmask 0
    %42 = vst.msk [vmem:[#allocation2] sm:$0x1] %vm41, %v40
    // Predicated region
    $region14: #{person_mse_loss.1} parent=1 // pred_check
      _
    $region15: #{person_mse_loss.1} parent=1 // pred_check_branch
      %44 = sbr.rel (0) target = $region17
    $region16: #{person_mse_loss.1} parent=1 // pred_region
      %s46 = ssub.s32 16, 16
      %47 = vsyncadd [#allocation3], %s46
      %s49 = sshll.u32 [#allocation2], 4
      %s50 = int_to_ptr.vmem [resolvable:$true] %s49
      %52 = dma.vmem_to_hbm [thread:$0]  %s50, 16, %s3, [#allocation3]
    $region17: #{person_mse_loss.1} parent=1 // pred_fallthru
      _
    // Predicated region
    $region18: #{person_mse_loss.1} parent=1 // pred_check
      _
    $region19: #{person_mse_loss.1} parent=1 // pred_check_branch
      %54 = sbr.rel (0) target = $region21
    $region20: #{person_mse_loss.1} parent=1 // pred_region
      %55 = dma.done [#allocation3], 16
    $region21: #{person_mse_loss.1} parent=1 // pred_fallthru
      _
    %56 = vsyncpa [#allocation3], 1

</llo_original>
